<compile_context>
chip_gen: v6e
topology: v6e:2x2x1
jax: 0.10.0
libtpu: 0.0.40
codegen_flags: <defaults>
</compile_context>

<pallas_src>
import math
import functools

import jax
import jax.numpy as jnp
from jax.experimental import pallas as pl
from jax.experimental.pallas import tpu as pltpu


def _round_up(a, m):
    return (a + m - 1) // m * m


# ------------------------------ fused kernel ---------------------------------

def _fused_patch_kernel(x_ref, w_ref, o_ref, *, stride, r):
    """x_ref: (TS, n_blk, stride) f32, w_ref: (patch_len, D) f32, o_ref: (TS, P, D)."""
    ts, p, d = o_ref.shape
    x = x_ref[...]                                      # (TS, n_blk, stride) f32
    acc = jnp.zeros((ts, p, d), jnp.float32)
    for j in range(r):                                  # r is small (typically 2); static unroll
        # Shifted block window: rows p..p+P-1 of the non-overlapping blocks.
        lhs = x[:, j:j + p, :].astype(jnp.bfloat16)                        # (TS, P, stride)
        wj = w_ref[j * stride:(j + 1) * stride, :].astype(jnp.bfloat16)    # (stride, D)
        wb = jnp.broadcast_to(wj, (ts, stride, d))                         # batched-matmul rhs
        acc = acc + jnp.einsum("spk,skd->spd", lhs, wb,
                               preferred_element_type=jnp.float32)
    o_ref[...] = acc.astype(o_ref.dtype)


def _fused_path(xb, w, *, P, stride, r, out_dtype):
    S, n_blk, _ = xb.shape
    patch_len, D = w.shape

    # ~2048 output rows (= TS * P) per grid step, out tile capped at ~4 MiB,
    # and keep >= 2 grid steps when possible (v7x dual TensorCore).
    TS = max(1, 2048 // max(P, 1))
    TS = min(TS, max(1, (4 << 20) // max(P * D * 4, 1)))
    TS = min(TS, S)
    if S >= 2 and pl.cdiv(S, TS) < 2:
        TS = pl.cdiv(S, 2)
    grid = (pl.cdiv(S, TS),)

    kernel = functools.partial(_fused_patch_kernel, stride=stride, r=r)
    return pl.pallas_call(
        kernel,
        out_shape=jax.ShapeDtypeStruct((S, P, D), out_dtype),
        grid=grid,
        in_specs=[
            pl.BlockSpec((TS, n_blk, stride), lambda i: (i, 0, 0)),
            pl.BlockSpec((patch_len, D), lambda i: (0, 0)),
        ],
        out_specs=pl.BlockSpec((TS, P, D), lambda i: (i, 0, 0)),
        compiler_params=pltpu.CompilerParams(dimension_semantics=("parallel",)),
    )(xb, w)


# ----------------------------- fallback kernel --------------------------------

def _flat_matmul_kernel(x_ref, w_ref, o_ref):
    o_ref[...] = jnp.dot(
        x_ref[...].astype(jnp.bfloat16),
        w_ref[...].astype(jnp.bfloat16),
        preferred_element_type=jnp.float32,
    ).astype(o_ref.dtype)


def _fallback_path(xp, w, *, P, patch_len, stride, out_dtype):
    B, V, _ = xp.shape
    _, D = w.shape
    # Build patches with static slices + stack (no XLA gather); cast xp to bf16
    # first so the (M, patch_len) matrix is half-size in HBM.
    xp16 = xp.astype(jnp.bfloat16)
    patches = jnp.stack(
        [xp16[:, :, p * stride:p * stride + patch_len] for p in range(P)], axis=2)
    M = B * V * P
    flat = patches.reshape(M, patch_len)

    TM = 1024
    if M <= TM:
        TM = _round_up(pl.cdiv(M, 2), 8) if M > 8 else _round_up(M, 8)
    grid = (pl.cdiv(M, TM),)   # partial boundary blocks (if any) are masked by Pallas

    out = pl.pallas_call(
        _flat_matmul_kernel,
        out_shape=jax.ShapeDtypeStruct((M, D), out_dtype),
        grid=grid,
        in_specs=[
            pl.BlockSpec((TM, patch_len), lambda i: (i, 0)),
            pl.BlockSpec((patch_len, D), lambda i: (0, 0)),
        ],
        out_specs=pl.BlockSpec((TM, D), lambda i: (i, 0)),
        compiler_params=pltpu.CompilerParams(dimension_semantics=("parallel",)),
    )(flat, w)
    return out


# -------------------------------- wrapper -------------------------------------

def patch_embedding_1(x, w, *, patch_len, stride, out_dtype=jnp.float32):
    """x: (B, n_vars, L) f32, w: (patch_len, d_model) f32.

    Returns (out, n_vars) with out: (B, n_vars, num_patches, d_model).
    """
    B, n_vars, L = x.shape
    K, D = w.shape
    assert K == patch_len

    L_pad = L + stride
    P = (L_pad - patch_len) // stride + 1

    # ReplicationPad1d((0, stride)): pad right by `stride` replicating the edge.
    xp = jnp.pad(x, ((0, 0), (0, 0), (0, stride)), mode="edge")     # (B, V, L+stride)

    if patch_len % stride == 0 and L % stride == 0:
        # Fused pad/unfold/cast/matmul: the padded series is passed as
        # non-overlapping stride-wide blocks; patches are formed in-VMEM.
        S = B * n_vars
        n_blk = L_pad // stride
        xb = xp.reshape(S, n_blk, stride)                           # metadata-only reshape
        out = _fused_path(xb, w, P=P, stride=stride, r=patch_len // stride,
                          out_dtype=out_dtype)                      # (S, P, D)
    else:
        out = _fallback_path(xp, w, P=P, patch_len=patch_len, stride=stride,
                             out_dtype=out_dtype)                   # (B*V*P, D)

    # TODO(synk): nn.Dropout(p) is identity in eval mode; training-mode random
    # dropout is not reproduced here.
    return out.reshape(B, n_vars, P, D), n_vars


# ------------------------------ pure-JAX ref -----------------------------------

def reference(x, w, patch_len, stride):
    B, n_vars, L = x.shape
    xp = jnp.pad(x, ((0, 0), (0, 0), (0, stride)), mode="edge")
    P = (L + stride - patch_len) // stride + 1
    idx = jnp.arange(P)[:, None] * stride + jnp.arange(patch_len)[None, :]
    patches = xp[..., idx]                                           # (B, V, P, patch_len)
    return jnp.einsum("bvpk,kd->bvpd", patches, w)


# --------------------------------- main ----------------------------------------

if __name__ == "__main__":
    key = jax.random.PRNGKey(0)
    kx, kw, kx2, kw2 = jax.random.split(key, 4)

    # --- fused path (standard PatchTST config: patch_len % stride == 0) ---
    B, N_VARS, SEQ_LEN = 2, 4, 32
    PATCH_LEN, STRIDE, D_MODEL = 16, 8, 128   # d_model multiple of 128 -> lane-dense out

    x = jax.random.normal(kx, (B, N_VARS, SEQ_LEN), dtype=jnp.float32)
    # nn.Linear(patch_len, d_model, bias=False) default init: U(+-1/sqrt(fan_in)),
    # stored here as (patch_len, d_model).
    bound = 1.0 / math.sqrt(PATCH_LEN)
    w = jax.random.uniform(kw, (PATCH_LEN, D_MODEL), jnp.float32, -bound, bound)

    out, n_vars = patch_embedding_1(x, w, patch_len=PATCH_LEN, stride=STRIDE)
    out = jax.block_until_ready(out)

    ref = reference(x, w, PATCH_LEN, STRIDE)
    P = (SEQ_LEN + STRIDE - PATCH_LEN) // STRIDE + 1
    assert n_vars == N_VARS
    assert out.shape == (B, N_VARS, P, D_MODEL)
    assert out.dtype == jnp.float32
    # bf16 matmul operands (f32 accumulation) vs f32 reference -> loosened tol.
    assert jnp.allclose(out, ref, atol=3e-2, rtol=3e-2), "fused path mismatch vs reference"

    # --- fallback path (patch_len not a multiple of stride) ---
    B2, V2, L2 = 2, 4, 28
    PATCH2, STRIDE2 = 12, 8
    x2 = jax.random.normal(kx2, (B2, V2, L2), dtype=jnp.float32)
    bound2 = 1.0 / math.sqrt(PATCH2)
    w2 = jax.random.uniform(kw2, (PATCH2, D_MODEL), jnp.float32, -bound2, bound2)

    out2, n_vars2 = patch_embedding_1(x2, w2, patch_len=PATCH2, stride=STRIDE2)
    out2 = jax.block_until_ready(out2)

    ref2 = reference(x2, w2, PATCH2, STRIDE2)
    P2 = (L2 + STRIDE2 - PATCH2) // STRIDE2 + 1
    assert n_vars2 == V2
    assert out2.shape == (B2, V2, P2, D_MODEL)
    assert jnp.allclose(out2, ref2, atol=3e-2, rtol=3e-2), "fallback path mismatch vs reference"

    print("KERNEL_OK")
</pallas_src>

<mosaic_0001>
module attributes {stable_mosaic.version = 11 : i64} {
  func.func @_fused_patch_kernel(%arg0: i32, %arg1: memref<4x5x8xf32, #tpu.memory_space<vmem>>, %arg2: memref<16x128xf32, #tpu.memory_space<vmem>>, %arg3: memref<4x4x128xf32, #tpu.memory_space<vmem>>) attributes {dimension_semantics = [#tpu.dimension_semantics<parallel>], iteration_bounds = array<i64: 2>, scalar_prefetch = 0 : i64, scratch_operands = 0 : i64, tpu.core_type = #tpu.core_type<tc>, window_params = [{transform_indices = @transform_0, window_bounds = array<i64: 4, 5, 8>}, {pipeline_mode = #tpu.pipeline_mode<synchronous>, transform_indices = @transform_1, window_bounds = array<i64: 16, 128>}, {transform_indices = @transform_2, window_bounds = array<i64: 4, 4, 128>}]} {
    %c0 = arith.constant 0 : index
    %c0_0 = arith.constant 0 : index
    %c0_1 = arith.constant 0 : index
    %0 = vector.load %arg1[%c0, %c0_0, %c0_1] : memref<4x5x8xf32, #tpu.memory_space<vmem>>, vector<4x5x8xf32>
    %cst = arith.constant 0.000000e+00 : f32
    %1 = vector.broadcast %cst : f32 to vector<4x4x128xf32>
    %2 = vector.extract_strided_slice %0 {offsets = [0, 0, 0], sizes = [4, 4, 8], strides = [1, 1, 1]} : vector<4x5x8xf32> to vector<4x4x8xf32>
    %3 = arith.truncf %2 : vector<4x4x8xf32> to vector<4x4x8xbf16>
    %c0_2 = arith.constant 0 : index
    %c0_3 = arith.constant 0 : index
    %4 = vector.load %arg2[%c0_2, %c0_3] : memref<16x128xf32, #tpu.memory_space<vmem>>, vector<8x128xf32>
    %5 = arith.truncf %4 : vector<8x128xf32> to vector<8x128xbf16>
    %6 = vector.shape_cast %5 : vector<8x128xbf16> to vector<1x8x128xbf16>
    %7 = vector.broadcast %6 : vector<1x8x128xbf16> to vector<4x8x128xbf16>
    "tpu.trace_start"() <{level = 10 : i32, message = "spk,skd->spd"}> : () -> ()
    %cst_4 = arith.constant dense<0.000000e+00> : vector<4x4x128xf32>
    %8 = tpu.matmul %3, %7, %cst_4 {dimension_numbers = #tpu.dot_dimension_numbers<[2], [1], [1], [2], [0, 0, 0, 1, 1, 2], [0], [0]>} : vector<4x4x8xbf16>, vector<4x8x128xbf16>, vector<4x4x128xf32> -> vector<4x4x128xf32>
    "tpu.trace_stop"() : () -> ()
    %9 = arith.addf %1, %8 : vector<4x4x128xf32>
    %10 = vector.extract_strided_slice %0 {offsets = [0, 1, 0], sizes = [4, 4, 8], strides = [1, 1, 1]} : vector<4x5x8xf32> to vector<4x4x8xf32>
    %11 = arith.truncf %10 : vector<4x4x8xf32> to vector<4x4x8xbf16>
    %c8 = arith.constant 8 : index
    %c0_5 = arith.constant 0 : index
    %12 = vector.load %arg2[%c8, %c0_5] : memref<16x128xf32, #tpu.memory_space<vmem>>, vector<8x128xf32>
    %13 = arith.truncf %12 : vector<8x128xf32> to vector<8x128xbf16>
    %14 = vector.shape_cast %13 : vector<8x128xbf16> to vector<1x8x128xbf16>
    %15 = vector.broadcast %14 : vector<1x8x128xbf16> to vector<4x8x128xbf16>
    "tpu.trace_start"() <{level = 10 : i32, message = "spk,skd->spd"}> : () -> ()
    %cst_6 = arith.constant dense<0.000000e+00> : vector<4x4x128xf32>
    %16 = tpu.matmul %11, %15, %cst_6 {dimension_numbers = #tpu.dot_dimension_numbers<[2], [1], [1], [2], [0, 0, 0, 1, 1, 2], [0], [0]>} : vector<4x4x8xbf16>, vector<4x8x128xbf16>, vector<4x4x128xf32> -> vector<4x4x128xf32>
    "tpu.trace_stop"() : () -> ()
    %17 = arith.addf %9, %16 : vector<4x4x128xf32>
    %c0_7 = arith.constant 0 : index
    %c0_8 = arith.constant 0 : index
    %c0_9 = arith.constant 0 : index
    %18 = vector.load %arg3[%c0_7, %c0_8, %c0_9] : memref<4x4x128xf32, #tpu.memory_space<vmem>>, vector<4x4x128xf32>
    tpu.vector_store %arg3[%c0_7, %c0_8, %c0_9], %17 {strides = array<i32>} : memref<4x4x128xf32, #tpu.memory_space<vmem>>, vector<4x4x128xf32>,
    return
  }
  func.func @transform_0(%arg0: i32) -> (i32, i32, i32) {
    %c0_i32 = arith.constant 0 : i32
    %c0_i32_0 = arith.constant 0 : i32
    %c0_i32_1 = arith.constant 0 : i32
    return %arg0, %c0_i32, %c0_i32_0 : i32, i32, i32
  }
  func.func @transform_1(%arg0: i32) -> (i32, i32) {
    %c0_i32 = arith.constant 0 : i32
    %c0_i32_0 = arith.constant 0 : i32
    %c0_i32_1 = arith.constant 0 : i32
    return %c0_i32, %c0_i32_0 : i32, i32
  }
  func.func @transform_2(%arg0: i32) -> (i32, i32, i32) {
    %c0_i32 = arith.constant 0 : i32
    %c0_i32_0 = arith.constant 0 : i32
    %c0_i32_1 = arith.constant 0 : i32
    return %arg0, %c0_i32, %c0_i32_0 : i32, i32, i32
  }
}

</mosaic_0001>

<llo_original>
// kernel: tpu_custom_call.1
$region0: #{tpu_custom_call.1}
  #allocation0 [shape = 'u32[]', space=smem, size = 0x4, offset = 0x4, fixed_abs, tag = 'smem constant byte address 0x4 - core index']
  #allocation1 [shape = 'u32[144,128]{1,0:T(1,128)}', space=vmem, size = 0x12000, scoped, tag = 'internal scratch']
  %s0 = inlined_call_operand.vmem [shape: f32[8,5,8], index: 0, kind: input, shape index: {}]
  %s1 = inlined_call_operand.vmem [shape: f32[16,128], index: 1, kind: input, shape index: {}]
  %s2 = inlined_call_operand.hbm [shape: f32[8,4,128], index: 2, kind: output, shape index: {}]
  %s3 = sld [smem:[#allocation0]]
  $region41: #{tpu_custom_call.1} parent=0
    _
  %s5 = ssub.s32 1, %s3
  %s6 = scalar_select 0, %s5, %s3
  $region1: #{tpu_custom_call.1} parent=0
    #allocation2 [shape = 'u8[16384]{0}', space=vmem, size = 0x4000, scoped, tag = 'output window, operand 0']
    #allocation3 [shape = 's32[2]{0}', space=sflag, size = 0x8, scoped, tag = 'scoped memory for tpu_custom_call.1']
    %7 = vsyncpa [#allocation3], 0
    %s8 = scalar_lea.sflag [#allocation3], 1
    %9 = vsyncpa %s8, 0
    loop: start=0, step=1, limit=4
    $region2: #{tpu_custom_call.1} parent=1 // loop_pre_header
      _
    $region3: #{tpu_custom_call.1} parent=1 // loop_header
      %s11 = sphi 0, %s15
      %p12 = scmp.ge.s32.totalorder %s11, 4
      %s21 = sphi 0, %s23
      %s24 = sphi 0, %s21
      %s25 = sphi 0, %s24
      %s41 = sphi 0, %s25
      %s45 = sphi 0, %s45
      %s47 = sphi 0, %s45
      %s48 = sphi 0, %s47
      %s62 = sphi 0, %s48
      %s68 = sphi 0, %s70
      %s71 = sphi 0, %s68
      %s72 = sphi 0, %s71
      %s88 = sphi 0, %s72
    $region4: #{tpu_custom_call.1} parent=1 // loop_header_branch
      %14 = sbr.rel (%p12) target = $region8
    $region5: #{tpu_custom_call.1} parent=1 // loop_body
      %s16 = ssub.s32 %s11, 1
      %s17 = ssub.s32 %s11, 2
      %s18 = sadd.s32 %s11, 1
      %s19 = ssub.s32 %s11, %s18
      %p20 = scmp.eq.s32.totalorder %s19, 0
      %s22 = sadd.s32 %s21, 1
      %s23 = scalar_select %p20, %s21, %s22
      %p26 = pneg %p20
      %p27 = scmp.eq.s32.totalorder %s11, 1
      %p28 = por %p26, %p27
      %p29 = scmp.ne.s32.totalorder %s21, %s24
      %p30 = scmp.eq.s32.totalorder %s11, 0
      %p31 = por %p29, %p30
      %p32 = scmp.ne.s32.totalorder %s21, %s24
      %p33 = scmp.eq.s32.totalorder %s16, 1
      %p34 = por %p32, %p33
      %p35 = scmp.ne.s32.totalorder %s24, %s25
      %p36 = scmp.eq.s32.totalorder %s16, 0
      %p37 = por %p35, %p36
      %p38 = scmp.ne.s32.totalorder %s24, %s25
      %p39 = scmp.eq.s32.totalorder %s17, 1
      %p40 = por %p38, %p39
      %p42 = scmp.ne.s32.totalorder %s25, %s41
      %p43 = scmp.eq.s32.totalorder %s17, 0
      %p44 = por %p42, %p43
      %s46 = sadd.s32 %s45, 1
      %p49 = scmp.eq.s32.totalorder %s11, 1
      %p50 = scmp.ne.s32.totalorder %s45, %s47
      %p51 = scmp.eq.s32.totalorder %s11, 0
      %p52 = por %p50, %p51
      %p53 = scmp.ne.s32.totalorder %s45, %s47
      %p54 = scmp.eq.s32.totalorder %s16, 1
      %p55 = por %p53, %p54
      %p56 = scmp.ne.s32.totalorder %s47, %s48
      %p57 = scmp.eq.s32.totalorder %s16, 0
      %p58 = por %p56, %p57
      %p59 = scmp.ne.s32.totalorder %s47, %s48
      %p60 = scmp.eq.s32.totalorder %s17, 1
      %p61 = por %p59, %p60
      %p63 = scmp.ne.s32.totalorder %s48, %s62
      %p64 = scmp.eq.s32.totalorder %s17, 0
      %p65 = por %p63, %p64
      %s66 = ssub.s32 %s11, %s18
      %p67 = scmp.eq.s32.totalorder %s66, 0
      %s69 = sadd.s32 %s68, 1
      %s70 = scalar_select %p67, %s68, %s69
      %p73 = pneg %p67
      %p74 = scmp.eq.s32.totalorder %s11, 1
      %p75 = por %p73, %p74
      %p76 = scmp.ne.s32.totalorder %s68, %s71
      %p77 = scmp.eq.s32.totalorder %s11, 0
      %p78 = por %p76, %p77
      %p79 = scmp.ne.s32.totalorder %s68, %s71
      %p80 = scmp.eq.s32.totalorder %s16, 1
      %p81 = por %p79, %p80
      %p82 = scmp.ne.s32.totalorder %s71, %s72
      %p83 = scmp.eq.s32.totalorder %s16, 0
      %p84 = por %p82, %p83
      %p85 = scmp.ne.s32.totalorder %s71, %s72
      %p86 = scmp.eq.s32.totalorder %s17, 1
      %p87 = por %p85, %p86
      %p89 = scmp.ne.s32.totalorder %s72, %s88
      %p90 = scmp.eq.s32.totalorder %s17, 0
      %p91 = por %p89, %p90
      %p92 = scmp.le.s32.totalorder 1, %s11
      %p93 = scmp.lt.s32.totalorder %s11, 3
      %p94 = pnand %p92, %p93
      %p95 = pneg %p94
      // Predicated region
      $region9: #{tpu_custom_call.1} parent=5 // pred_check
        _
      $region10: #{tpu_custom_call.1} parent=5 // pred_check_branch
        %97 = sbr.rel (%p94) target = $region12
      $region11: #{tpu_custom_call.1} parent=5 // pred_region
        %s98 = ssub.s32 %s11, 1
        // Predicated region
        $region13: #{tpu_custom_call.1} parent=11 // pred_check
          %p99 = pneg %p58
        $region14: #{tpu_custom_call.1} parent=11 // pred_check_branch
          %101 = sbr.rel (%p99) target = $region16
        $region15: #{tpu_custom_call.1} parent=11 // pred_region
          _
        $region16: #{tpu_custom_call.1} parent=11 // pred_fallthru
          _
      $region12: #{tpu_custom_call.1} parent=5 // pred_fallthru
        _
      %p102 = scmp.lt.s32.totalorder %s11, 2
      // Predicated region
      $region17: #{tpu_custom_call.1} parent=5 // pred_check
        %p103 = pneg %p102
      $region18: #{tpu_custom_call.1} parent=5 // pred_check_branch
        %105 = sbr.rel (%p103) target = $region20
      $region19: #{tpu_custom_call.1} parent=5 // pred_region
        // Predicated region
        $region21: #{tpu_custom_call.1} parent=19 // pred_check
          %p106 = pneg %p31
        $region22: #{tpu_custom_call.1} parent=19 // pred_check_branch
          %108 = sbr.rel (%p106) target = $region24
        $region23: #{tpu_custom_call.1} parent=19 // pred_region
          %s109 = smul.u32 4, %s11
          %p110 = scmp.lt.s32.totalorder %s109, 7
          %s111 = scalar_select %p110, %s109, 7
          %s112 = smul.addr %s111, 8
          %s113 = scalar_lea.vmem %s0, %s112
          %s114 = smul.u32 4, %s11
        $region24: #{tpu_custom_call.1} parent=19 // pred_fallthru
          _
      $region20: #{tpu_custom_call.1} parent=5 // pred_fallthru
        _
      %p115 = scmp.le.s32.totalorder 1, %s11
      %p116 = scmp.lt.s32.totalorder %s11, 3
      %p117 = pnand %p115, %p116
      %p118 = pneg %p117
      // Predicated region
      $region25: #{tpu_custom_call.1} parent=5 // pred_check
        _
      $region26: #{tpu_custom_call.1} parent=5 // pred_check_branch
        %120 = sbr.rel (%p117) target = $region28
      $region27: #{tpu_custom_call.1} parent=5 // pred_region
        %s121 = ssub.s32 %s11, 1
        %s122 = smul.u32 4, %s16
        %p123 = scmp.lt.s32.totalorder %s122, 7
        %s124 = scalar_select %p123, %s122, 7
        %s125 = smul.addr %s124, 8
        %s126 = scalar_lea.vmem %s0, %s125
        %p127 = pneg %p37
        %p128 = pneg %p34
        %p129 = pneg %p58
        %p130 = pneg %p55
        %p131 = pneg %p84
        %p132 = pneg %p81
        %s133 = sand.u32 %s71, 1
        %s134 = scalar_lea.sflag [#allocation3], %s133
        %s135 = sand.u32 %s71, 1
        %s136 = smul.addr %s135, 16
        %s137 = scalar_lea.vmem [#allocation2], %s136
        %s138 = smul.u32 4, %s16
        %p139 = scmp.lt.s32.totalorder %s138, 7
        %s140 = scalar_select %p139, %s138, 7
        %s141 = smul.addr %s140, 8
        %s142 = scalar_lea.vmem %s0, %s141
        %s143 = smul.u32 4, %s16
        %s144 = smul.u32 4, %s16
        %v146 = vld [vmem:[%s142] sm:$0x1f]
        %v147 = vld [vmem:[%s142 + $0x8] sm:$0x1f]
        %v148 = vld [vmem:[%s142 + $0x10] sm:$0x1f]
        %v149 = vld [vmem:[%s142 + $0x18] sm:$0x1f]
        %v150 = vpack.c.bf16 %v146, %v146
        %v151 = vpack.c.bf16 %v147, %v147
        %v152 = vpack.c.bf16 %v148, %v148
        %v153 = vpack.c.bf16 %v149, %v149
        %v154 = vld [vmem:[%s1] sm:$0xff]
        %v155 = vpack.c.bf16 %v154, %v154
        %v156 = vld [vmem:[%s1 + $0x8] sm:$0xff]
        %v157 = vpack.c.bf16 %v156, %v156
        %v159 = vshrl.u32 %v150, 16
        %v161 = vshll.u32 %v150, 16
        %v163 = vrot.slane %v161, 1
        %v164 = vor.u32 %v159, %v163
        %vm165 = vcmask 64512
        %v167 = vsel %vm165, %v164, 0
        %vm169 = vcmask 1043456
        %v171 = vsel %vm169, %v157, 0
        %173 = vmatprep.subr.bf16.mxu0 0
        %174 = vmatpush1.bf16.msra.mxu0 0
        %175 = vmatprep.subr.bf16.mxu0 0
        %176 = vmatpush1.bf16.msra.mxu0 0
        %177 = vmatprep.subr.bf16.mxu0 0
        %178 = vmatpush1.bf16.msra.mxu0 0
        %179 = vmatprep.subr.bf16.mxu0 0
        %180 = vmatpush1.bf16.msra.mxu0 0
        %181 = vmatprep.subr.bf16.mxu0 0
        %182 = vmatpush1.bf16.msra.mxu0 0
        %183 = vmatprep.subr.bf16.mxu0 0
        %184 = vmatpush1.bf16.msra.mxu0 0
        %185 = vmatprep.subr.bf16.mxu0 0
        %186 = vmatpush1.bf16.msra.mxu0 0
        %187 = vmatprep.subr.bf16.mxu0 0
        %188 = vmatpush1.bf16.msra.mxu0 %v171
        %189 = vmatprep.subr.bf16.mxu0 0
        %190 = vmatpush2.bf16.msra.mxu0 0
        %191 = vmatprep.subr.bf16.mxu0 0
        %192 = vmatpush2.bf16.msra.mxu0 0
        %193 = vmatprep.subr.bf16.mxu0 0
        %194 = vmatpush2.bf16.msra.mxu0 0
        %195 = vmatprep.subr.bf16.mxu0 0
        %196 = vmatpush2.bf16.msra.mxu0 0
        %197 = vmatprep.subr.bf16.mxu0 0
        %198 = vmatpush2.bf16.msra.mxu0 0
        %199 = vmatprep.subr.bf16.mxu0 0
        %200 = vmatpush2.bf16.msra.mxu0 0
        %201 = vmatprep.subr.bf16.mxu0 0
        %202 = vmatpush2.bf16.msra.mxu0 0
        %203 = vmatprep.subr.bf16.mxu0 0
        %204 = vmatpush2.bf16.msra.mxu0 0
        %205 = vmatprep.mubr.bf16.mxu0 0
        %206 = vmatmul.mubr.bf16.gmra.mxu0 %v167
        %v207 = vpop.f32.mrf.mxu0
        %v208 = vadd.f32 0.0, %v207
        %v209 = vpop.f32.mrf.mxu0
        %v210 = vpop.f32.mrf.mxu0
        %v211 = vpop.f32.mrf.mxu0
        %212 = vdwg.mxu0
        %v214 = vshrl.u32 %v151, 16
        %v216 = vshll.u32 %v151, 16
        %v218 = vrot.slane %v216, 1
        %v219 = vor.u32 %v214, %v218
        %v221 = vsel %vm165, %v219, 0
        %223 = vmatprep.subr.bf16.mxu0 0
        %224 = vmatpush1.bf16.msra.mxu0 0
        %225 = vmatprep.subr.bf16.mxu0 0
        %226 = vmatpush1.bf16.msra.mxu0 0
        %227 = vmatprep.subr.bf16.mxu0 0
        %228 = vmatpush1.bf16.msra.mxu0 0
        %229 = vmatprep.subr.bf16.mxu0 0
        %230 = vmatpush1.bf16.msra.mxu0 0
        %231 = vmatprep.subr.bf16.mxu0 0
        %232 = vmatpush1.bf16.msra.mxu0 0
        %233 = vmatprep.subr.bf16.mxu0 0
        %234 = vmatpush1.bf16.msra.mxu0 0
        %235 = vmatprep.subr.bf16.mxu0 0
        %236 = vmatpush1.bf16.msra.mxu0 0
        %237 = vmatprep.subr.bf16.mxu0 0
        %238 = vmatpush1.bf16.msra.mxu0 %v171
        %239 = vmatprep.subr.bf16.mxu0 0
        %240 = vmatpush2.bf16.msra.mxu0 0
        %241 = vmatprep.subr.bf16.mxu0 0
        %242 = vmatpush2.bf16.msra.mxu0 0
        %243 = vmatprep.subr.bf16.mxu0 0
        %244 = vmatpush2.bf16.msra.mxu0 0
        %245 = vmatprep.subr.bf16.mxu0 0
        %246 = vmatpush2.bf16.msra.mxu0 0
        %247 = vmatprep.subr.bf16.mxu0 0
        %248 = vmatpush2.bf16.msra.mxu0 0
        %249 = vmatprep.subr.bf16.mxu0 0
        %250 = vmatpush2.bf16.msra.mxu0 0
        %251 = vmatprep.subr.bf16.mxu0 0
        %252 = vmatpush2.bf16.msra.mxu0 0
        %253 = vmatprep.subr.bf16.mxu0 0
        %254 = vmatpush2.bf16.msra.mxu0 0
        %255 = vmatprep.mubr.bf16.mxu0 0
        %256 = vmatmul.mubr.bf16.gmra.mxu0 %v221
        %v257 = vpop.f32.mrf.mxu0
        %v258 = vadd.f32 0.0, %v257
        %v259 = vpop.f32.mrf.mxu0
        %v260 = vpop.f32.mrf.mxu0
        %v261 = vpop.f32.mrf.mxu0
        %262 = vdwg.mxu0
        %v264 = vshrl.u32 %v152, 16
        %v266 = vshll.u32 %v152, 16
        %v268 = vrot.slane %v266, 1
        %v269 = vor.u32 %v264, %v268
        %v271 = vsel %vm165, %v269, 0
        %273 = vmatprep.subr.bf16.mxu0 0
        %274 = vmatpush1.bf16.msra.mxu0 0
        %275 = vmatprep.subr.bf16.mxu0 0
        %276 = vmatpush1.bf16.msra.mxu0 0
        %277 = vmatprep.subr.bf16.mxu0 0
        %278 = vmatpush1.bf16.msra.mxu0 0
        %279 = vmatprep.subr.bf16.mxu0 0
        %280 = vmatpush1.bf16.msra.mxu0 0
        %281 = vmatprep.subr.bf16.mxu0 0
        %282 = vmatpush1.bf16.msra.mxu0 0
        %283 = vmatprep.subr.bf16.mxu0 0
        %284 = vmatpush1.bf16.msra.mxu0 0
        %285 = vmatprep.subr.bf16.mxu0 0
        %286 = vmatpush1.bf16.msra.mxu0 0
        %287 = vmatprep.subr.bf16.mxu0 0
        %288 = vmatpush1.bf16.msra.mxu0 %v171
        %289 = vmatprep.subr.bf16.mxu0 0
        %290 = vmatpush2.bf16.msra.mxu0 0
        %291 = vmatprep.subr.bf16.mxu0 0
        %292 = vmatpush2.bf16.msra.mxu0 0
        %293 = vmatprep.subr.bf16.mxu0 0
        %294 = vmatpush2.bf16.msra.mxu0 0
        %295 = vmatprep.subr.bf16.mxu0 0
        %296 = vmatpush2.bf16.msra.mxu0 0
        %297 = vmatprep.subr.bf16.mxu0 0
        %298 = vmatpush2.bf16.msra.mxu0 0
        %299 = vmatprep.subr.bf16.mxu0 0
        %300 = vmatpush2.bf16.msra.mxu0 0
        %301 = vmatprep.subr.bf16.mxu0 0
        %302 = vmatpush2.bf16.msra.mxu0 0
        %303 = vmatprep.subr.bf16.mxu0 0
        %304 = vmatpush2.bf16.msra.mxu0 0
        %305 = vmatprep.mubr.bf16.mxu0 0
        %306 = vmatmul.mubr.bf16.gmra.mxu0 %v271
        %v307 = vpop.f32.mrf.mxu0
        %v308 = vadd.f32 0.0, %v307
        %v309 = vpop.f32.mrf.mxu0
        %v310 = vpop.f32.mrf.mxu0
        %v311 = vpop.f32.mrf.mxu0
        %312 = vdwg.mxu0
        %v314 = vshrl.u32 %v153, 16
        %v316 = vshll.u32 %v153, 16
        %v318 = vrot.slane %v316, 1
        %v319 = vor.u32 %v314, %v318
        %v321 = vsel %vm165, %v319, 0
        %323 = vmatprep.subr.bf16.mxu0 0
        %324 = vmatpush1.bf16.msra.mxu0 0
        %325 = vmatprep.subr.bf16.mxu0 0
        %326 = vmatpush1.bf16.msra.mxu0 0
        %327 = vmatprep.subr.bf16.mxu0 0
        %328 = vmatpush1.bf16.msra.mxu0 0
        %329 = vmatprep.subr.bf16.mxu0 0
        %330 = vmatpush1.bf16.msra.mxu0 0
        %331 = vmatprep.subr.bf16.mxu0 0
        %332 = vmatpush1.bf16.msra.mxu0 0
        %333 = vmatprep.subr.bf16.mxu0 0
        %334 = vmatpush1.bf16.msra.mxu0 0
        %335 = vmatprep.subr.bf16.mxu0 0
        %336 = vmatpush1.bf16.msra.mxu0 0
        %337 = vmatprep.subr.bf16.mxu0 0
        %338 = vmatpush1.bf16.msra.mxu0 %v171
        %339 = vmatprep.subr.bf16.mxu0 0
        %340 = vmatpush2.bf16.msra.mxu0 0
        %341 = vmatprep.subr.bf16.mxu0 0
        %342 = vmatpush2.bf16.msra.mxu0 0
        %343 = vmatprep.subr.bf16.mxu0 0
        %344 = vmatpush2.bf16.msra.mxu0 0
        %345 = vmatprep.subr.bf16.mxu0 0
        %346 = vmatpush2.bf16.msra.mxu0 0
        %347 = vmatprep.subr.bf16.mxu0 0
        %348 = vmatpush2.bf16.msra.mxu0 0
        %349 = vmatprep.subr.bf16.mxu0 0
        %350 = vmatpush2.bf16.msra.mxu0 0
        %351 = vmatprep.subr.bf16.mxu0 0
        %352 = vmatpush2.bf16.msra.mxu0 0
        %353 = vmatprep.subr.bf16.mxu0 0
        %354 = vmatpush2.bf16.msra.mxu0 0
        %355 = vmatprep.mubr.bf16.mxu0 0
        %356 = vmatmul.mubr.bf16.gmra.mxu0 %v321
        %v357 = vpop.f32.mrf.mxu0
        %v358 = vadd.f32 0.0, %v357
        %v359 = vpop.f32.mrf.mxu0
        %v360 = vpop.f32.mrf.mxu0
        %v361 = vpop.f32.mrf.mxu0
        %362 = vdwg.mxu0
        %v363 = vsel %vm165, %v150, 0
        %v366 = vsel %vm169, %v155, 0
        %368 = vmatprep.subr.bf16.mxu0 0
        %369 = vmatpush1.bf16.msra.mxu0 0
        %370 = vmatprep.subr.bf16.mxu0 0
        %371 = vmatpush1.bf16.msra.mxu0 0
        %372 = vmatprep.subr.bf16.mxu0 0
        %373 = vmatpush1.bf16.msra.mxu0 0
        %374 = vmatprep.subr.bf16.mxu0 0
        %375 = vmatpush1.bf16.msra.mxu0 0
        %376 = vmatprep.subr.bf16.mxu0 0
        %377 = vmatpush1.bf16.msra.mxu0 0
        %378 = vmatprep.subr.bf16.mxu0 0
        %379 = vmatpush1.bf16.msra.mxu0 0
        %380 = vmatprep.subr.bf16.mxu0 0
        %381 = vmatpush1.bf16.msra.mxu0 0
        %382 = vmatprep.subr.bf16.mxu0 0
        %383 = vmatpush1.bf16.msra.mxu0 %v366
        %384 = vmatprep.subr.bf16.mxu0 0
        %385 = vmatpush2.bf16.msra.mxu0 0
        %386 = vmatprep.subr.bf16.mxu0 0
        %387 = vmatpush2.bf16.msra.mxu0 0
        %388 = vmatprep.subr.bf16.mxu0 0
        %389 = vmatpush2.bf16.msra.mxu0 0
        %390 = vmatprep.subr.bf16.mxu0 0
        %391 = vmatpush2.bf16.msra.mxu0 0
        %392 = vmatprep.subr.bf16.mxu0 0
        %393 = vmatpush2.bf16.msra.mxu0 0
        %394 = vmatprep.subr.bf16.mxu0 0
        %395 = vmatpush2.bf16.msra.mxu0 0
        %396 = vmatprep.subr.bf16.mxu0 0
        %397 = vmatpush2.bf16.msra.mxu0 0
        %398 = vmatprep.subr.bf16.mxu0 0
        %399 = vmatpush2.bf16.msra.mxu0 0
        %400 = vmatprep.mubr.bf16.mxu0 0
        %401 = vmatmul.mubr.bf16.gmra.mxu0 %v363
        %v402 = vpop.f32.mrf.mxu0
        %v403 = vadd.f32 %v208, %v402
        %v404 = vpop.f32.mrf.mxu0
        %v405 = vpop.f32.mrf.mxu0
        %v406 = vpop.f32.mrf.mxu0
        %407 = vdwg.mxu0
        %v408 = vsel %vm165, %v151, 0
        %410 = vmatprep.subr.bf16.mxu0 0
        %411 = vmatpush1.bf16.msra.mxu0 0
        %412 = vmatprep.subr.bf16.mxu0 0
        %413 = vmatpush1.bf16.msra.mxu0 0
        %414 = vmatprep.subr.bf16.mxu0 0
        %415 = vmatpush1.bf16.msra.mxu0 0
        %416 = vmatprep.subr.bf16.mxu0 0
        %417 = vmatpush1.bf16.msra.mxu0 0
        %418 = vmatprep.subr.bf16.mxu0 0
        %419 = vmatpush1.bf16.msra.mxu0 0
        %420 = vmatprep.subr.bf16.mxu0 0
        %421 = vmatpush1.bf16.msra.mxu0 0
        %422 = vmatprep.subr.bf16.mxu0 0
        %423 = vmatpush1.bf16.msra.mxu0 0
        %424 = vmatprep.subr.bf16.mxu0 0
        %425 = vmatpush1.bf16.msra.mxu0 %v366
        %426 = vmatprep.subr.bf16.mxu0 0
        %427 = vmatpush2.bf16.msra.mxu0 0
        %428 = vmatprep.subr.bf16.mxu0 0
        %429 = vmatpush2.bf16.msra.mxu0 0
        %430 = vmatprep.subr.bf16.mxu0 0
        %431 = vmatpush2.bf16.msra.mxu0 0
        %432 = vmatprep.subr.bf16.mxu0 0
        %433 = vmatpush2.bf16.msra.mxu0 0
        %434 = vmatprep.subr.bf16.mxu0 0
        %435 = vmatpush2.bf16.msra.mxu0 0
        %436 = vmatprep.subr.bf16.mxu0 0
        %437 = vmatpush2.bf16.msra.mxu0 0
        %438 = vmatprep.subr.bf16.mxu0 0
        %439 = vmatpush2.bf16.msra.mxu0 0
        %440 = vmatprep.subr.bf16.mxu0 0
        %441 = vmatpush2.bf16.msra.mxu0 0
        %442 = vmatprep.mubr.bf16.mxu0 0
        %443 = vmatmul.mubr.bf16.gmra.mxu0 %v408
        %v444 = vpop.f32.mrf.mxu0
        %v445 = vadd.f32 %v258, %v444
        %v446 = vpop.f32.mrf.mxu0
        %v447 = vpop.f32.mrf.mxu0
        %v448 = vpop.f32.mrf.mxu0
        %449 = vdwg.mxu0
        %v450 = vsel %vm165, %v152, 0
        %452 = vmatprep.subr.bf16.mxu0 0
        %453 = vmatpush1.bf16.msra.mxu0 0
        %454 = vmatprep.subr.bf16.mxu0 0
        %455 = vmatpush1.bf16.msra.mxu0 0
        %456 = vmatprep.subr.bf16.mxu0 0
        %457 = vmatpush1.bf16.msra.mxu0 0
        %458 = vmatprep.subr.bf16.mxu0 0
        %459 = vmatpush1.bf16.msra.mxu0 0
        %460 = vmatprep.subr.bf16.mxu0 0
        %461 = vmatpush1.bf16.msra.mxu0 0
        %462 = vmatprep.subr.bf16.mxu0 0
        %463 = vmatpush1.bf16.msra.mxu0 0
        %464 = vmatprep.subr.bf16.mxu0 0
        %465 = vmatpush1.bf16.msra.mxu0 0
        %466 = vmatprep.subr.bf16.mxu0 0
        %467 = vmatpush1.bf16.msra.mxu0 %v366
        %468 = vmatprep.subr.bf16.mxu0 0
        %469 = vmatpush2.bf16.msra.mxu0 0
        %470 = vmatprep.subr.bf16.mxu0 0
        %471 = vmatpush2.bf16.msra.mxu0 0
        %472 = vmatprep.subr.bf16.mxu0 0
        %473 = vmatpush2.bf16.msra.mxu0 0
        %474 = vmatprep.subr.bf16.mxu0 0
        %475 = vmatpush2.bf16.msra.mxu0 0
        %476 = vmatprep.subr.bf16.mxu0 0
        %477 = vmatpush2.bf16.msra.mxu0 0
        %478 = vmatprep.subr.bf16.mxu0 0
        %479 = vmatpush2.bf16.msra.mxu0 0
        %480 = vmatprep.subr.bf16.mxu0 0
        %481 = vmatpush2.bf16.msra.mxu0 0
        %482 = vmatprep.subr.bf16.mxu0 0
        %483 = vmatpush2.bf16.msra.mxu0 0
        %484 = vmatprep.mubr.bf16.mxu0 0
        %485 = vmatmul.mubr.bf16.gmra.mxu0 %v450
        %v486 = vpop.f32.mrf.mxu0
        %v487 = vadd.f32 %v308, %v486
        %v488 = vpop.f32.mrf.mxu0
        %v489 = vpop.f32.mrf.mxu0
        %v490 = vpop.f32.mrf.mxu0
        %491 = vdwg.mxu0
        %v492 = vsel %vm165, %v153, 0
        %494 = vmatprep.subr.bf16.mxu0 0
        %495 = vmatpush1.bf16.msra.mxu0 0
        %496 = vmatprep.subr.bf16.mxu0 0
        %497 = vmatpush1.bf16.msra.mxu0 0
        %498 = vmatprep.subr.bf16.mxu0 0
        %499 = vmatpush1.bf16.msra.mxu0 0
        %500 = vmatprep.subr.bf16.mxu0 0
        %501 = vmatpush1.bf16.msra.mxu0 0
        %502 = vmatprep.subr.bf16.mxu0 0
        %503 = vmatpush1.bf16.msra.mxu0 0
        %504 = vmatprep.subr.bf16.mxu0 0
        %505 = vmatpush1.bf16.msra.mxu0 0
        %506 = vmatprep.subr.bf16.mxu0 0
        %507 = vmatpush1.bf16.msra.mxu0 0
        %508 = vmatprep.subr.bf16.mxu0 0
        %509 = vmatpush1.bf16.msra.mxu0 %v366
        %510 = vmatprep.subr.bf16.mxu0 0
        %511 = vmatpush2.bf16.msra.mxu0 0
        %512 = vmatprep.subr.bf16.mxu0 0
        %513 = vmatpush2.bf16.msra.mxu0 0
        %514 = vmatprep.subr.bf16.mxu0 0
        %515 = vmatpush2.bf16.msra.mxu0 0
        %516 = vmatprep.subr.bf16.mxu0 0
        %517 = vmatpush2.bf16.msra.mxu0 0
        %518 = vmatprep.subr.bf16.mxu0 0
        %519 = vmatpush2.bf16.msra.mxu0 0
        %520 = vmatprep.subr.bf16.mxu0 0
        %521 = vmatpush2.bf16.msra.mxu0 0
        %522 = vmatprep.subr.bf16.mxu0 0
        %523 = vmatpush2.bf16.msra.mxu0 0
        %524 = vmatprep.subr.bf16.mxu0 0
        %525 = vmatpush2.bf16.msra.mxu0 0
        %526 = vmatprep.mubr.bf16.mxu0 0
        %527 = vmatmul.mubr.bf16.gmra.mxu0 %v492
        %v528 = vpop.f32.mrf.mxu0
        %v529 = vadd.f32 %v358, %v528
        %v530 = vpop.f32.mrf.mxu0
        %v531 = vpop.f32.mrf.mxu0
        %v532 = vpop.f32.mrf.mxu0
        %533 = vdwg.mxu0
        %534 = vst [vmem:[%s137] sm:$0xf] %v403
        %535 = vst [vmem:[%s137 + $0x4] sm:$0xf] %v445
        %536 = vst [vmem:[%s137 + $0x8] sm:$0xf] %v487
        %537 = vst [vmem:[%s137 + $0xc] sm:$0xf] %v529
        %s538 = sand.u32 %s71, 1
        %s539 = scalar_lea.sflag [#allocation3], %s538
        %s540 = sand.u32 %s71, 1
        %s541 = smul.addr %s540, 16
        %s542 = scalar_lea.vmem [#allocation2], %s541
        // Predicated region
        $region29: #{tpu_custom_call.1} parent=27 // pred_check
          %p543 = pneg %p81
        $region30: #{tpu_custom_call.1} parent=27 // pred_check_branch
          %545 = sbr.rel (%p543) target = $region32
        $region31: #{tpu_custom_call.1} parent=27 // pred_region
          %s546 = smul.u32 4, %s16
          %s548 = ssub.s32 256, 256
          %549 = vsyncadd %s539, %s548
          %s550 = smul.addr %s546, 64
          %s551 = scalar_lea.hbm %s2, %s550
          %s552 = sshll.u32 %s542, 4
          %s553 = int_to_ptr.vmem [resolvable:$true] %s552
          %558 = dma.vmem_to_hbm [thread:$0]  %s553, 256, %s551, %s539, 64, 64, 4
        $region32: #{tpu_custom_call.1} parent=27 // pred_fallthru
          _
      $region28: #{tpu_custom_call.1} parent=5 // pred_fallthru
        _
      %p559 = scmp.le.s32.totalorder 2, %s11
      // Predicated region
      $region33: #{tpu_custom_call.1} parent=5 // pred_check
        %p560 = pneg %p559
      $region34: #{tpu_custom_call.1} parent=5 // pred_check_branch
        %562 = sbr.rel (%p560) target = $region36
      $region35: #{tpu_custom_call.1} parent=5 // pred_region
        %s563 = ssub.s32 %s11, 2
        // Predicated region
        $region37: #{tpu_custom_call.1} parent=35 // pred_check
          %p564 = pneg %p87
        $region38: #{tpu_custom_call.1} parent=35 // pred_check_branch
          %566 = sbr.rel (%p564) target = $region40
        $region39: #{tpu_custom_call.1} parent=35 // pred_region
          %s567 = sand.u32 %s72, 1
          %s568 = scalar_lea.sflag [#allocation3], %s567
          %s569 = sand.u32 %s72, 1
          %s570 = smul.addr %s569, 16
          %s571 = scalar_lea.vmem [#allocation2], %s570
          %572 = dma.done %s568, 256
        $region40: #{tpu_custom_call.1} parent=35 // pred_fallthru
          _
      $region36: #{tpu_custom_call.1} parent=5 // pred_fallthru
        _
    $region6: #{tpu_custom_call.1} parent=1 // loop_footer
      %s15 = sadd.s32 1, %s11
    $region7: #{tpu_custom_call.1} parent=1 // loop_footer_branch
      %10 = sbr.rel target = $region3
    $region8: #{tpu_custom_call.1} parent=1 // loop_exit
      _
    %573 = vsyncpa [#allocation3], 1
    %s574 = scalar_lea.sflag [#allocation3], 1
    %575 = vsyncpa %s574, 1

</llo_original>
